<compile_context>
chip_gen: v6e
topology: v6e:2x2x1
jax: 0.10.0
libtpu: 0.0.40
codegen_flags: <defaults>
</compile_context>

<pallas_src>
import jax
import jax.numpy as jnp
from jax.experimental import pallas as pl
from jax.experimental.pallas import tpu as pltpu

_LANE_CHOICES = (1024, 512, 256, 128)   # lane-dense widths (multiples of 128)
_STEP_BYTES = 8 * 1024 * 1024           # target (input + output) HBM bytes per grid step
_VMEM_LIMIT_BYTES = 32 * 1024 * 1024    # covers 2x(in+out) blocks w/ headroom on all gens
_FAST_PATH_OUT_BYTES = 1 * 1024 * 1024  # below this, plain jnp is optimal


def _ste_kernel(x_ref, o_ref):
    # Elementwise hot path: compare in the input dtype, widen only on store.
    o_ref[...] = (x_ref[...] > 0).astype(jnp.float32)


def _round_up(n: int, m: int) -> int:
    return ((n + m - 1) // m) * m


def _round_down(n: int, m: int) -> int:
    return (n // m) * m


def straight_through_estimator(x: jax.Array, *, force_pallas: bool = False) -> jax.Array:
    """Forward of StraightThroughEstimator: (x > 0).astype(float32)."""
    orig_shape = x.shape
    total = int(x.size)
    if total == 0:
        return jnp.zeros(orig_shape, jnp.float32)

    # Small-input fast path: pallas_call launch overhead dominates; XLA's fused
    # elementwise op is already at roofline for tiny tensors.
    if not force_pallas and total * 4 <= _FAST_PATH_OUT_BYTES:
        return (x > 0).astype(jnp.float32)

    # Pick the widest lane count that divides the element count so the common
    # case needs no padding copy at all.
    lanes = _LANE_CHOICES[0]
    if total % 128 == 0:
        for cand in _LANE_CHOICES:
            if total % cand == 0:
                lanes = cand
                break

    rows = pl.cdiv(total, lanes)
    padded_total = rows * lanes

    flat = x.reshape(-1)
    if padded_total != total:
        # Minimal padding (< lanes elements) only when size isn't a multiple
        # of 128; the pad lanes are dropped by the slice below.
        flat = jnp.pad(flat, (0, padded_total - total))
    x2d = flat.reshape(rows, lanes)

    # Tile rows so each grid step moves ~_STEP_BYTES of HBM traffic regardless
    # of the input dtype (output is always f32). Multiple of 32 keeps sublane
    # packing happy for bf16/int8 inputs.
    itemsize = int(jnp.dtype(x.dtype).itemsize)
    budget_tr = max(_round_down(_STEP_BYTES // (lanes * (itemsize + 4)), 32), 8)
    # Ensure at least 2 balanced blocks for mid-size inputs (v7x has 2 TCs);
    # huge inputs keep the full budget tile, tiny ones collapse to 8 rows.
    tr = min(budget_tr, max(_round_up(pl.cdiv(rows, 2), 8), 8))
    grid = (pl.cdiv(rows, tr),)  # ragged last block: OOB writes are masked

    out2d = pl.pallas_call(
        _ste_kernel,
        out_shape=jax.ShapeDtypeStruct((rows, lanes), jnp.float32),
        grid_spec=pltpu.PrefetchScalarGridSpec(
            num_scalar_prefetch=0,
            grid=grid,
            in_specs=[pl.BlockSpec((tr, lanes), lambda i: (i, 0))],
            out_specs=pl.BlockSpec((tr, lanes), lambda i: (i, 0)),
        ),
        compiler_params=pltpu.CompilerParams(
            dimension_semantics=("parallel",),
            vmem_limit_bytes=_VMEM_LIMIT_BYTES,
        ),
    )(x2d)

    out_flat = out2d.reshape(-1)
    if padded_total != total:
        out_flat = out_flat[:total]
    return out_flat.reshape(orig_shape)


if __name__ == "__main__":
    key = jax.random.PRNGKey(0)
    k1, k2 = jax.random.split(key)

    # Small NCHW input consistent with the module's usage.
    x = jax.random.normal(k1, (2, 4, 16, 16), dtype=jnp.float32)
    y_ref = (x > 0).astype(jnp.float32)

    # Default path (small input -> fast path).
    y_fast = jax.block_until_ready(straight_through_estimator(x))
    assert y_fast.shape == x.shape and y_fast.dtype == jnp.float32
    assert bool(jnp.all(y_fast == y_ref))

    # Force the Pallas kernel path (exercises the no-pad, ragged-grid route:
    # 2048 elements -> (2, 1024) slab, partial 8-row block).
    y_kernel = jax.block_until_ready(straight_through_estimator(x, force_pallas=True))
    assert y_kernel.shape == x.shape and y_kernel.dtype == jnp.float32
    assert bool(jnp.all(y_kernel == y_ref))

    # Odd-sized input: exercises the minimal-pad + output-slice route.
    x_odd = jax.random.normal(k2, (3, 5, 17, 19), dtype=jnp.float32)
    y_odd = jax.block_until_ready(straight_through_estimator(x_odd, force_pallas=True))
    y_odd_ref = (x_odd > 0).astype(jnp.float32)
    assert y_odd.shape == x_odd.shape and y_odd.dtype == jnp.float32
    assert bool(jnp.all(y_odd == y_odd_ref))

    print("KERNEL_OK")
</pallas_src>

<mosaic_0001>
module attributes {stable_mosaic.version = 11 : i64} {
  func.func @_ste_kernel(%arg0: i32, %arg1: memref<8x1024xf32, #tpu.memory_space<vmem>>, %arg2: memref<8x1024xf32, #tpu.memory_space<vmem>>) attributes {dimension_semantics = [#tpu.dimension_semantics<parallel>], iteration_bounds = array<i64: 1>, scalar_prefetch = 0 : i64, scratch_operands = 0 : i64, tpu.core_type = #tpu.core_type<tc>, window_params = [{transform_indices = @transform_0, window_bounds = array<i64: 8, 1024>}, {transform_indices = @transform_1, window_bounds = array<i64: 8, 1024>}]} {
    %c0 = arith.constant 0 : index
    %c0_0 = arith.constant 0 : index
    %0 = vector.load %arg1[%c0, %c0_0] : memref<8x1024xf32, #tpu.memory_space<vmem>>, vector<8x1024xf32>
    %cst = arith.constant 0.000000e+00 : f32
    %1 = vector.broadcast %cst : f32 to vector<8x1024xf32>
    %2 = arith.cmpf ogt, %0, %1 : vector<8x1024xf32>
    %3 = arith.extui %2 : vector<8x1024xi1> to vector<8x1024xi32>
    %4 = arith.sitofp %3 : vector<8x1024xi32> to vector<8x1024xf32>
    %c0_1 = arith.constant 0 : index
    %c0_2 = arith.constant 0 : index
    %5 = vector.load %arg2[%c0_1, %c0_2] : memref<8x1024xf32, #tpu.memory_space<vmem>>, vector<8x1024xf32>
    tpu.vector_store %arg2[%c0_1, %c0_2], %4 {strides = array<i32>} : memref<8x1024xf32, #tpu.memory_space<vmem>>, vector<8x1024xf32>,
    return
  }
  func.func @transform_0(%arg0: i32) -> (i32, i32) {
    %c0_i32 = arith.constant 0 : i32
    %c0_i32_0 = arith.constant 0 : i32
    return %arg0, %c0_i32 : i32, i32
  }
  func.func @transform_1(%arg0: i32) -> (i32, i32) {
    %c0_i32 = arith.constant 0 : i32
    %c0_i32_0 = arith.constant 0 : i32
    return %arg0, %c0_i32 : i32, i32
  }
}

</mosaic_0001>

<llo_original>
// kernel: tpu_custom_call.1
$region0: #{tpu_custom_call.1}
  #allocation0 [shape = 'u32[]', space=smem, size = 0x4, offset = 0x4, fixed_abs, tag = 'smem constant byte address 0x4 - core index']
  #allocation1 [shape = 'u32[144,128]{1,0:T(1,128)}', space=vmem, size = 0x12000, scoped, tag = 'internal scratch']
  %s0 = inlined_call_operand.hbm [shape: f32[2,1024], index: 0, kind: input, shape index: {}]
  %s1 = inlined_call_operand.hbm [shape: f32[2,1024], index: 1, kind: output, shape index: {}]
  %s2 = sld [smem:[#allocation0]]
  $region18: #{tpu_custom_call.1} parent=0
    _
  %s4 = ssub.s32 1, %s2
  %s5 = scalar_select 0, %s4, %s2
  $region1: #{tpu_custom_call.1} parent=0
    #allocation2 [shape = 'u8[32768]{0}', space=vmem, size = 0x8000, scoped, tag = 'input window, operand 0, single buffered']
    #allocation3 [shape = 's32[1]{0}', space=sflag, size = 0x4, scoped, tag = 'scoped memory for tpu_custom_call.1']
    #allocation4 [shape = 's32[1]{0}', space=sflag, size = 0x4, scoped, tag = 'scoped memory for tpu_custom_call.1']
    #allocation5 [shape = 'u8[32768]{0}', space=vmem, size = 0x8000, scoped, tag = 'output window, operand 0, single buffered']
    %6 = vsyncpa [#allocation3], 0
    %7 = vsyncpa [#allocation4], 0
    // Predicated region
    $region2: #{tpu_custom_call.1} parent=1 // pred_check
      _
    $region3: #{tpu_custom_call.1} parent=1 // pred_check_branch
      %9 = sbr.rel (0) target = $region5
    $region4: #{tpu_custom_call.1} parent=1 // pred_region
      %s11 = ssub.s32 1024, 256
      %12 = vsyncadd [#allocation3], %s11
      %s13 = sshll.u32 [#allocation2], 4
      %s14 = int_to_ptr.vmem [resolvable:$true] %s13
      %19 = dma.hbm_to_vmem [thread:$0]  %s0, 256, %s14, [#allocation3], 256, 256, 16
    $region5: #{tpu_custom_call.1} parent=1 // pred_fallthru
      _
    // Predicated region
    $region6: #{tpu_custom_call.1} parent=1 // pred_check
      _
    $region7: #{tpu_custom_call.1} parent=1 // pred_check_branch
      %21 = sbr.rel (0) target = $region9
    $region8: #{tpu_custom_call.1} parent=1 // pred_region
      %22 = dma.done [#allocation3], 1024
    $region9: #{tpu_custom_call.1} parent=1 // pred_fallthru
      _
    %v23 = vld [vmem:[#allocation2] sm:$0xff]
    %v24 = vld [vmem:[#allocation2 + $0x8] sm:$0xff]
    %v25 = vld [vmem:[#allocation2 + $0x10] sm:$0xff]
    %v26 = vld [vmem:[#allocation2 + $0x18] sm:$0xff]
    %v27 = vld [vmem:[#allocation2 + $0x20] sm:$0xff]
    %v28 = vld [vmem:[#allocation2 + $0x28] sm:$0xff]
    %v29 = vld [vmem:[#allocation2 + $0x30] sm:$0xff]
    %v30 = vld [vmem:[#allocation2 + $0x38] sm:$0xff]
    %vm31 = vcmp.gt.f32.partialorder %v23, 0.0
    %vm32 = vcmp.gt.f32.partialorder %v24, 0.0
    %vm33 = vcmp.gt.f32.partialorder %v25, 0.0
    %vm34 = vcmp.gt.f32.partialorder %v26, 0.0
    %vm35 = vcmp.gt.f32.partialorder %v27, 0.0
    %vm36 = vcmp.gt.f32.partialorder %v28, 0.0
    %vm37 = vcmp.gt.f32.partialorder %v29, 0.0
    %vm38 = vcmp.gt.f32.partialorder %v30, 0.0
    %v39 = vsel %vm31, 1, 0
    %v40 = vsel %vm32, 1, 0
    %v41 = vsel %vm33, 1, 0
    %v42 = vsel %vm34, 1, 0
    %v43 = vsel %vm35, 1, 0
    %v44 = vsel %vm36, 1, 0
    %v45 = vsel %vm37, 1, 0
    %v46 = vsel %vm38, 1, 0
    %v47 = vcvt.s32.f32 %v39
    %v48 = vcvt.s32.f32 %v40
    %v49 = vcvt.s32.f32 %v41
    %v50 = vcvt.s32.f32 %v42
    %v51 = vcvt.s32.f32 %v43
    %v52 = vcvt.s32.f32 %v44
    %v53 = vcvt.s32.f32 %v45
    %v54 = vcvt.s32.f32 %v46
    %55 = vst [vmem:[#allocation5] sm:$0xff] %v47
    %56 = vst [vmem:[#allocation5 + $0x8] sm:$0xff] %v48
    %57 = vst [vmem:[#allocation5 + $0x10] sm:$0xff] %v49
    %58 = vst [vmem:[#allocation5 + $0x18] sm:$0xff] %v50
    %59 = vst [vmem:[#allocation5 + $0x20] sm:$0xff] %v51
    %60 = vst [vmem:[#allocation5 + $0x28] sm:$0xff] %v52
    %61 = vst [vmem:[#allocation5 + $0x30] sm:$0xff] %v53
    %62 = vst [vmem:[#allocation5 + $0x38] sm:$0xff] %v54
    // Predicated region
    $region10: #{tpu_custom_call.1} parent=1 // pred_check
      _
    $region11: #{tpu_custom_call.1} parent=1 // pred_check_branch
      %64 = sbr.rel (0) target = $region13
    $region12: #{tpu_custom_call.1} parent=1 // pred_region
      %s66 = ssub.s32 1024, 256
      %67 = vsyncadd [#allocation4], %s66
      %s68 = sshll.u32 [#allocation5], 4
      %s69 = int_to_ptr.vmem [resolvable:$true] %s68
      %74 = dma.vmem_to_hbm [thread:$0]  %s69, 256, %s1, [#allocation4], 256, 256, 16
    $region13: #{tpu_custom_call.1} parent=1 // pred_fallthru
      _
    // Predicated region
    $region14: #{tpu_custom_call.1} parent=1 // pred_check
      _
    $region15: #{tpu_custom_call.1} parent=1 // pred_check_branch
      %76 = sbr.rel (0) target = $region17
    $region16: #{tpu_custom_call.1} parent=1 // pred_region
      %77 = dma.done [#allocation4], 1024
    $region17: #{tpu_custom_call.1} parent=1 // pred_fallthru
      _
    %78 = vsyncpa [#allocation3], 1
    %79 = vsyncpa [#allocation4], 1

</llo_original>
